<compile_context>
chip_gen: v5e
topology: v5e:2x2
jax: 0.10.0
libtpu: 0.0.40
codegen_flags: <defaults>
</compile_context>

<pallas_src>
import functools

import jax
import jax.numpy as jnp
from jax.experimental import pallas as pl
from jax.experimental.pallas import tpu as pltpu


def _round_up(x, m):
    return ((x + m - 1) // m) * m


def _head_kernel(x_ref, w1_ref, b1_ref, w2_ref, b2_ref, o_ref):
    # x_ref : (tm, Hp)  bf16     w1_ref: (Hp, Hp) bf16    b1_ref: (1, Hp) f32
    # w2_ref: (Hp, Lp)  bf16     b2_ref: (1, Lp)  f32     o_ref : (tm, Lp) f32
    x = x_ref[...]
    # dense: x @ W1^T + b1 (bf16 MXU inputs, f32 accumulation)
    h = jnp.dot(x, w1_ref[...], preferred_element_type=jnp.float32) + b1_ref[...]
    h = jnp.tanh(h)
    # out_proj: h @ W2^T + b2
    o = jnp.dot(h.astype(w2_ref.dtype), w2_ref[...],
                preferred_element_type=jnp.float32) + b2_ref[...]
    o_ref[...] = o.astype(o_ref.dtype)


@functools.partial(jax.jit, static_argnames=("tm",))
def model_head_forward(features, w_dense, b_dense, w_out, b_out, *, tm=256):
    """features: (B, S, H).  Returns (B, S, num_labels) in features.dtype."""
    B, S, H = features.shape
    L = w_out.shape[0]
    M = B * S

    Hp = _round_up(H, 128)          # lane-dense hidden dim
    Lp = _round_up(L, 128)          # lane-dense output dim (slice back below)
    tm_eff = min(tm, _round_up(M, 8))  # MXU-aligned row tile, capped by rows

    # Activations: flatten to (M, Hp), zero-pad hidden columns, cast to bf16.
    x2d = features.reshape(M, H)
    if Hp != H:
        x2d = jnp.pad(x2d, ((0, 0), (0, Hp - H)))
    x2d = x2d.astype(jnp.bfloat16)

    # Weights: pre-transposed and zero-padded.  Padded hidden units see
    # zero weight + zero bias -> tanh(0) = 0 -> contribute 0 to out_proj,
    # so padding is semantically a no-op.
    w1t = jnp.pad(w_dense.T, ((0, Hp - H), (0, Hp - H))).astype(jnp.bfloat16)  # (Hp, Hp)
    w2t = jnp.pad(w_out.T, ((0, Hp - H), (0, Lp - L))).astype(jnp.bfloat16)    # (Hp, Lp)
    b1 = jnp.pad(b_dense, (0, Hp - H)).reshape(1, Hp).astype(jnp.float32)
    b2 = jnp.pad(b_out, (0, Lp - L)).reshape(1, Lp).astype(jnp.float32)

    grid_m = pl.cdiv(M, tm_eff)
    out2d = pl.pallas_call(
        _head_kernel,
        out_shape=jax.ShapeDtypeStruct((M, Lp), jnp.float32),
        grid_spec=pltpu.PrefetchScalarGridSpec(
            num_scalar_prefetch=0,
            grid=(grid_m,),
            in_specs=[
                pl.BlockSpec((tm_eff, Hp), lambda i: (i, 0)),  # x row tile
                pl.BlockSpec((Hp, Hp), lambda i: (0, 0)),      # dense W^T (resident)
                pl.BlockSpec((1, Hp), lambda i: (0, 0)),       # dense bias
                pl.BlockSpec((Hp, Lp), lambda i: (0, 0)),      # out_proj W^T (resident)
                pl.BlockSpec((1, Lp), lambda i: (0, 0)),       # out_proj bias
            ],
            out_specs=pl.BlockSpec((tm_eff, Lp), lambda i: (i, 0)),
        ),
        compiler_params=pltpu.CompilerParams(
            dimension_semantics=("parallel",)),
    )(x2d, w1t, b1, w2t, b2)

    return out2d[:, :L].reshape(B, S, L).astype(features.dtype)


def _init_linear(key, out_features, in_features):
    # Matches torch.nn.Linear default init: U(-1/sqrt(fan_in), 1/sqrt(fan_in)).
    kw, kb = jax.random.split(key)
    bound = 1.0 / jnp.sqrt(in_features)
    w = jax.random.uniform(kw, (out_features, in_features),
                           minval=-bound, maxval=bound, dtype=jnp.float32)
    b = jax.random.uniform(kb, (out_features,),
                           minval=-bound, maxval=bound, dtype=jnp.float32)
    return w, b


if __name__ == "__main__":
    key = jax.random.PRNGKey(0)
    k_x, k_d, k_o = jax.random.split(key, 3)

    batch, seq, hidden, num_labels = 2, 8, 32, 4

    features = jax.random.normal(k_x, (batch, seq, hidden), dtype=jnp.float32)
    w_dense, b_dense = _init_linear(k_d, hidden, hidden)
    w_out, b_out = _init_linear(k_o, num_labels, hidden)

    # NOTE: dropout is identity at inference; no randomness needed.
    out = model_head_forward(features, w_dense, b_dense, w_out, b_out)
    jax.block_until_ready(out)

    # Reference check in plain JAX (f32).  Tolerance loosened because the
    # kernel feeds the MXU with bf16 inputs (f32 accumulation).
    ref = jnp.tanh(features @ w_dense.T + b_dense) @ w_out.T + b_out
    assert out.shape == (batch, seq, num_labels)
    assert jnp.allclose(out, ref, atol=2e-2, rtol=2e-2)

    print("KERNEL_OK")
</pallas_src>

<mosaic_0001>
module attributes {stable_mosaic.version = 11 : i64} {
  func.func @_head_kernel(%arg0: i32, %arg1: memref<16x128xbf16, #tpu.memory_space<vmem>>, %arg2: memref<128x128xbf16, #tpu.memory_space<vmem>>, %arg3: memref<1x128xf32, #tpu.memory_space<vmem>>, %arg4: memref<128x128xbf16, #tpu.memory_space<vmem>>, %arg5: memref<1x128xf32, #tpu.memory_space<vmem>>, %arg6: memref<16x128xf32, #tpu.memory_space<vmem>>) attributes {dimension_semantics = [#tpu.dimension_semantics<parallel>], iteration_bounds = array<i64: 1>, scalar_prefetch = 0 : i64, scratch_operands = 0 : i64, tpu.core_type = #tpu.core_type<tc>, window_params = [{transform_indices = @transform_0, window_bounds = array<i64: 16, 128>}, {pipeline_mode = #tpu.pipeline_mode<synchronous>, transform_indices = @transform_1, window_bounds = array<i64: 128, 128>}, {pipeline_mode = #tpu.pipeline_mode<synchronous>, transform_indices = @transform_2, window_bounds = array<i64: 1, 128>}, {pipeline_mode = #tpu.pipeline_mode<synchronous>, transform_indices = @transform_3, window_bounds = array<i64: 128, 128>}, {pipeline_mode = #tpu.pipeline_mode<synchronous>, transform_indices = @transform_4, window_bounds = array<i64: 1, 128>}, {transform_indices = @transform_5, window_bounds = array<i64: 16, 128>}]} {
    %c0 = arith.constant 0 : index
    %c0_0 = arith.constant 0 : index
    %0 = vector.load %arg1[%c0, %c0_0] : memref<16x128xbf16, #tpu.memory_space<vmem>>, vector<16x128xbf16>
    %c0_1 = arith.constant 0 : index
    %c0_2 = arith.constant 0 : index
    %1 = vector.load %arg2[%c0_1, %c0_2] : memref<128x128xbf16, #tpu.memory_space<vmem>>, vector<128x128xbf16>
    %cst = arith.constant dense<0.000000e+00> : vector<16x128xf32>
    %2 = tpu.matmul %0, %1, %cst {dimension_numbers = #tpu.dot_dimension_numbers<[1], [0], [0], [1], [0, 0, 1, 1], [], []>} : vector<16x128xbf16>, vector<128x128xbf16>, vector<16x128xf32> -> vector<16x128xf32>
    %c0_3 = arith.constant 0 : index
    %c0_4 = arith.constant 0 : index
    %3 = vector.load %arg3[%c0_3, %c0_4] : memref<1x128xf32, #tpu.memory_space<vmem>>, vector<1x128xf32>
    %4 = vector.broadcast %3 : vector<1x128xf32> to vector<16x128xf32>
    %5 = arith.addf %2, %4 : vector<16x128xf32>
    %6 = math.tanh %5 : vector<16x128xf32>
    %7 = arith.truncf %6 : vector<16x128xf32> to vector<16x128xbf16>
    %c0_5 = arith.constant 0 : index
    %c0_6 = arith.constant 0 : index
    %8 = vector.load %arg4[%c0_5, %c0_6] : memref<128x128xbf16, #tpu.memory_space<vmem>>, vector<128x128xbf16>
    %cst_7 = arith.constant dense<0.000000e+00> : vector<16x128xf32>
    %9 = tpu.matmul %7, %8, %cst_7 {dimension_numbers = #tpu.dot_dimension_numbers<[1], [0], [0], [1], [0, 0, 1, 1], [], []>} : vector<16x128xbf16>, vector<128x128xbf16>, vector<16x128xf32> -> vector<16x128xf32>
    %c0_8 = arith.constant 0 : index
    %c0_9 = arith.constant 0 : index
    %10 = vector.load %arg5[%c0_8, %c0_9] : memref<1x128xf32, #tpu.memory_space<vmem>>, vector<1x128xf32>
    %11 = vector.broadcast %10 : vector<1x128xf32> to vector<16x128xf32>
    %12 = arith.addf %9, %11 : vector<16x128xf32>
    %c0_10 = arith.constant 0 : index
    %c0_11 = arith.constant 0 : index
    %13 = vector.load %arg6[%c0_10, %c0_11] : memref<16x128xf32, #tpu.memory_space<vmem>>, vector<16x128xf32>
    tpu.vector_store %arg6[%c0_10, %c0_11], %12 {strides = array<i32>} : memref<16x128xf32, #tpu.memory_space<vmem>>, vector<16x128xf32>,
    return
  }
  func.func @transform_0(%arg0: i32) -> (i32, i32) {
    %c0_i32 = arith.constant 0 : i32
    %c0_i32_0 = arith.constant 0 : i32
    return %arg0, %c0_i32 : i32, i32
  }
  func.func @transform_1(%arg0: i32) -> (i32, i32) {
    %c0_i32 = arith.constant 0 : i32
    %c0_i32_0 = arith.constant 0 : i32
    %c0_i32_1 = arith.constant 0 : i32
    return %c0_i32, %c0_i32_0 : i32, i32
  }
  func.func @transform_2(%arg0: i32) -> (i32, i32) {
    %c0_i32 = arith.constant 0 : i32
    %c0_i32_0 = arith.constant 0 : i32
    %c0_i32_1 = arith.constant 0 : i32
    return %c0_i32, %c0_i32_0 : i32, i32
  }
  func.func @transform_3(%arg0: i32) -> (i32, i32) {
    %c0_i32 = arith.constant 0 : i32
    %c0_i32_0 = arith.constant 0 : i32
    %c0_i32_1 = arith.constant 0 : i32
    return %c0_i32, %c0_i32_0 : i32, i32
  }
  func.func @transform_4(%arg0: i32) -> (i32, i32) {
    %c0_i32 = arith.constant 0 : i32
    %c0_i32_0 = arith.constant 0 : i32
    %c0_i32_1 = arith.constant 0 : i32
    return %c0_i32, %c0_i32_0 : i32, i32
  }
  func.func @transform_5(%arg0: i32) -> (i32, i32) {
    %c0_i32 = arith.constant 0 : i32
    %c0_i32_0 = arith.constant 0 : i32
    return %arg0, %c0_i32 : i32, i32
  }
}

</mosaic_0001>

<llo_original>
// kernel: model_head_forward.1
$region0: #{model_head_forward.1}
  #allocation0 [shape = 'u32[]', space=smem, size = 0x4, offset = 0x4, fixed_abs, tag = 'smem constant byte address 0x4 - core index']
  #allocation1 [shape = 'u32[72,128]{1,0:T(1,128)}', space=vmem, size = 0x9000, scoped, tag = 'internal scratch']
  %s0 = inlined_call_operand.vmem [shape: bf16[16,128], index: 0, kind: input, shape index: {}]
  %s1 = inlined_call_operand.vmem [shape: bf16[128,128], index: 1, kind: input, shape index: {}]
  %s2 = inlined_call_operand.vmem [shape: f32[1,128], index: 2, kind: input, shape index: {}]
  %s3 = inlined_call_operand.vmem [shape: bf16[128,128], index: 3, kind: input, shape index: {}]
  %s4 = inlined_call_operand.vmem [shape: f32[1,128], index: 4, kind: input, shape index: {}]
  %s5 = inlined_call_operand.vmem [shape: f32[16,128], index: 5, kind: output, shape index: {}]
  %s6 = sld [smem:[#allocation0]]
  $region30: #{model_head_forward.1} parent=0
    _
  %s8 = ssub.s32 1, %s6
  %s9 = scalar_select 0, %s8, %s6
  // Predicated region
  $region2: #{model_head_forward.1} parent=0 // pred_check
    _
  $region3: #{model_head_forward.1} parent=0 // pred_check_branch
    %11 = sbr.rel (0) target = $region5
  $region4: #{model_head_forward.1} parent=0 // pred_region
    _
  $region5: #{model_head_forward.1} parent=0 // pred_fallthru
    _
  // Predicated region
  $region6: #{model_head_forward.1} parent=0 // pred_check
    _
  $region7: #{model_head_forward.1} parent=0 // pred_check_branch
    %13 = sbr.rel (0) target = $region9
  $region8: #{model_head_forward.1} parent=0 // pred_region
    _
  $region9: #{model_head_forward.1} parent=0 // pred_fallthru
    _
  // Predicated region
  $region10: #{model_head_forward.1} parent=0 // pred_check
    _
  $region11: #{model_head_forward.1} parent=0 // pred_check_branch
    %15 = sbr.rel (0) target = $region13
  $region12: #{model_head_forward.1} parent=0 // pred_region
    _
  $region13: #{model_head_forward.1} parent=0 // pred_fallthru
    _
  // Predicated region
  $region14: #{model_head_forward.1} parent=0 // pred_check
    _
  $region15: #{model_head_forward.1} parent=0 // pred_check_branch
    %17 = sbr.rel (0) target = $region17
  $region16: #{model_head_forward.1} parent=0 // pred_region
    _
  $region17: #{model_head_forward.1} parent=0 // pred_fallthru
    _
  // Predicated region
  $region18: #{model_head_forward.1} parent=0 // pred_check
    _
  $region19: #{model_head_forward.1} parent=0 // pred_check_branch
    %19 = sbr.rel (0) target = $region21
  $region20: #{model_head_forward.1} parent=0 // pred_region
    _
  $region21: #{model_head_forward.1} parent=0 // pred_fallthru
    _
  %v20 = vld [vmem:[%s0] sm:$0xf]
  %v21 = vld [vmem:[%s0 + $0x4] sm:$0xf]
  %v22 = vld [vmem:[%s1] sm:$0xf]
  %v23 = vld [vmem:[%s1 + $0x4] sm:$0xf]
  %v24 = vld [vmem:[%s1 + $0x8] sm:$0xf]
  %v25 = vld [vmem:[%s1 + $0xc] sm:$0xf]
  %v26 = vld [vmem:[%s1 + $0x10] sm:$0xf]
  %v27 = vld [vmem:[%s1 + $0x14] sm:$0xf]
  %v28 = vld [vmem:[%s1 + $0x18] sm:$0xf]
  %v29 = vld [vmem:[%s1 + $0x1c] sm:$0xf]
  %v30 = vld [vmem:[%s1 + $0x20] sm:$0xf]
  %v31 = vld [vmem:[%s1 + $0x24] sm:$0xf]
  %v32 = vld [vmem:[%s1 + $0x28] sm:$0xf]
  %v33 = vld [vmem:[%s1 + $0x2c] sm:$0xf]
  %v34 = vld [vmem:[%s1 + $0x30] sm:$0xf]
  %v35 = vld [vmem:[%s1 + $0x34] sm:$0xf]
  %v36 = vld [vmem:[%s1 + $0x38] sm:$0xf]
  %v37 = vld [vmem:[%s1 + $0x3c] sm:$0xf]
  %v38 = vld [vmem:[%s2] sm:$0x1]
  %v40 = vperm.slane %v38, 0
  %v44 = vunpack.c.l.b16 %v20
  %v45 = vunpack.c.l.b16 %v21
  %v46 = vpack.c.b16 %v45, %v44
  %v64 = vunpack.c.l.b16 %v22
  %v65 = vunpack.c.l.b16 %v23
  %v66 = vunpack.c.l.b16 %v24
  %v67 = vunpack.c.l.b16 %v25
  %v68 = vunpack.c.l.b16 %v26
  %v69 = vunpack.c.l.b16 %v27
  %v70 = vunpack.c.l.b16 %v28
  %v71 = vunpack.c.l.b16 %v29
  %v72 = vunpack.c.l.b16 %v30
  %v73 = vunpack.c.l.b16 %v31
  %v74 = vunpack.c.l.b16 %v32
  %v75 = vunpack.c.l.b16 %v33
  %v76 = vunpack.c.l.b16 %v34
  %v77 = vunpack.c.l.b16 %v35
  %v78 = vunpack.c.l.b16 %v36
  %v79 = vunpack.c.l.b16 %v37
  %v80 = vpack.c.b16 %v65, %v64
  %v81 = vpack.c.b16 %v67, %v66
  %v82 = vpack.c.b16 %v69, %v68
  %v83 = vpack.c.b16 %v71, %v70
  %v84 = vpack.c.b16 %v73, %v72
  %v85 = vpack.c.b16 %v75, %v74
  %v86 = vpack.c.b16 %v77, %v76
  %v87 = vpack.c.b16 %v79, %v78
  %96 = vmatpush.bf16.msra.mxu0 %v87
  %97 = vmatpush.bf16.msra.mxu0 %v86
  %98 = vmatpush.bf16.msra.mxu0 %v85
  %99 = vmatpush.bf16.msra.mxu0 %v84
  %100 = vmatpush.bf16.msra.mxu0 %v83
  %101 = vmatpush.bf16.msra.mxu0 %v82
  %102 = vmatpush.bf16.msra.mxu0 %v81
  %103 = vmatpush.bf16.msra.mxu0 %v80
  %104 = vmatmul.bf16.gmra.mxu0 %v46
  %v105 = vpop.f32.mrf.mxu0
  %v106 = vadd.f32 %v40, %v105
  %v107 = vpop.f32.mrf.mxu0
  %v108 = vadd.f32 %v40, %v107
  %109 = vdwg.mxu0
  %v110 = vtanh.pop %v106
  %v111 = vtanh.pop %v108
  %v112 = vpack.c.bf16 %v111, %v110
  %v113 = vld [vmem:[%s3] sm:$0xf]
  %v114 = vld [vmem:[%s3 + $0x4] sm:$0xf]
  %v115 = vld [vmem:[%s3 + $0x8] sm:$0xf]
  %v116 = vld [vmem:[%s3 + $0xc] sm:$0xf]
  %v117 = vld [vmem:[%s3 + $0x10] sm:$0xf]
  %v118 = vld [vmem:[%s3 + $0x14] sm:$0xf]
  %v119 = vld [vmem:[%s3 + $0x18] sm:$0xf]
  %v120 = vld [vmem:[%s3 + $0x1c] sm:$0xf]
  %v121 = vld [vmem:[%s3 + $0x20] sm:$0xf]
  %v122 = vld [vmem:[%s3 + $0x24] sm:$0xf]
  %v123 = vld [vmem:[%s3 + $0x28] sm:$0xf]
  %v124 = vld [vmem:[%s3 + $0x2c] sm:$0xf]
  %v125 = vld [vmem:[%s3 + $0x30] sm:$0xf]
  %v126 = vld [vmem:[%s3 + $0x34] sm:$0xf]
  %v127 = vld [vmem:[%s3 + $0x38] sm:$0xf]
  %v128 = vld [vmem:[%s3 + $0x3c] sm:$0xf]
  %v129 = vld [vmem:[%s4] sm:$0x1]
  %v131 = vperm.slane %v129, 0
  %v149 = vunpack.c.l.b16 %v113
  %v150 = vunpack.c.l.b16 %v114
  %v151 = vunpack.c.l.b16 %v115
  %v152 = vunpack.c.l.b16 %v116
  %v153 = vunpack.c.l.b16 %v117
  %v154 = vunpack.c.l.b16 %v118
  %v155 = vunpack.c.l.b16 %v119
  %v156 = vunpack.c.l.b16 %v120
  %v157 = vunpack.c.l.b16 %v121
  %v158 = vunpack.c.l.b16 %v122
  %v159 = vunpack.c.l.b16 %v123
  %v160 = vunpack.c.l.b16 %v124
  %v161 = vunpack.c.l.b16 %v125
  %v162 = vunpack.c.l.b16 %v126
  %v163 = vunpack.c.l.b16 %v127
  %v164 = vunpack.c.l.b16 %v128
  %v165 = vpack.c.b16 %v150, %v149
  %v166 = vpack.c.b16 %v152, %v151
  %v167 = vpack.c.b16 %v154, %v153
  %v168 = vpack.c.b16 %v156, %v155
  %v169 = vpack.c.b16 %v158, %v157
  %v170 = vpack.c.b16 %v160, %v159
  %v171 = vpack.c.b16 %v162, %v161
  %v172 = vpack.c.b16 %v164, %v163
  %181 = vmatpush.bf16.msra.mxu0 %v172
  %182 = vmatpush.bf16.msra.mxu0 %v171
  %183 = vmatpush.bf16.msra.mxu0 %v170
  %184 = vmatpush.bf16.msra.mxu0 %v169
  %185 = vmatpush.bf16.msra.mxu0 %v168
  %186 = vmatpush.bf16.msra.mxu0 %v167
  %187 = vmatpush.bf16.msra.mxu0 %v166
  %188 = vmatpush.bf16.msra.mxu0 %v165
  %189 = vmatmul.bf16.gmra.mxu0 %v112
  %v190 = vpop.f32.mrf.mxu0
  %v191 = vadd.f32 %v131, %v190
  %v192 = vpop.f32.mrf.mxu0
  %v193 = vadd.f32 %v131, %v192
  %194 = vdwg.mxu0
  %195 = vst [vmem:[%s5] sm:$0xff] %v191
  %196 = vst [vmem:[%s5 + $0x8] sm:$0xff] %v193
  // Predicated region
  $region22: #{model_head_forward.1} parent=0 // pred_check
    _
  $region23: #{model_head_forward.1} parent=0 // pred_check_branch
    %198 = sbr.rel (0) target = $region25
  $region24: #{model_head_forward.1} parent=0 // pred_region
    _
  $region25: #{model_head_forward.1} parent=0 // pred_fallthru
    _
  // Predicated region
  $region26: #{model_head_forward.1} parent=0 // pred_check
    _
  $region27: #{model_head_forward.1} parent=0 // pred_check_branch
    %200 = sbr.rel (0) target = $region29
  $region28: #{model_head_forward.1} parent=0 // pred_region
    _
  $region29: #{model_head_forward.1} parent=0 // pred_fallthru
    _

</llo_original>
